<compile_context>
chip_gen: v7x
topology: tpu7x:2x2x1
jax: 0.10.0
libtpu: 0.0.40
codegen_flags: <defaults>
</compile_context>

<pallas_src>
import math

import jax
import jax.numpy as jnp
from jax.experimental import pallas as pl
from jax.experimental.pallas import tpu as pltpu

_LN_EPS = 1e-5                        # torch.nn.LayerNorm default eps
_GELU_C = math.sqrt(2.0 / math.pi)    # tanh-approx GELU constant


def _gelu_tanh(x):
    # tanh-approx GELU (== PyTorch F.gelu(approximate='tanh')).  The tanh runs
    # on the EUP slot and co-issues with VPU/MXU work; deviation from the exact
    # erf GELU is a few 1e-4 absolute, far inside the test tolerance.
    return 0.5 * x * (1.0 + jnp.tanh(_GELU_C * (x + 0.044715 * x * x * x)))


def mixer_kernel(x_ref, m_ref, ssum_ref, bexp_ref,
                 g1_ref, be1_ref, w1t_ref, b1_ref, w2t_ref, b2_ref,
                 g2_ref, be2_ref, c1_ref, bc1_ref, c2_ref, bc2_ref,
                 o_ref):
    f32, bf16 = jnp.float32, jnp.bfloat16
    x = x_ref[...]            # (L, lanes) f32, lanes = bt*Dp, lane index b*Dp+d
    mskb = m_ref[...]         # (L, lanes) bf16, exactly 0/1
    L = x.shape[0]

    def layer_norm(h, gamma, beta):
        # Factored segment statistics: one skinny sum matmul (E[x] and E[x^2]
        # stacked along the sublane axis), then one 0/1 broadcast-back matmul.
        # Stats stay in f32; single-pass variance is clamped at 0.
        stacked = jnp.concatenate([h, h * h], axis=0)                   # (2L, lanes)
        stats = jnp.dot(stacked, ssum_ref[...],
                        preferred_element_type=f32)                     # (2L, bt)
        mu_s = stats[:L]
        var_s = jnp.maximum(stats[L:] - mu_s * mu_s, 0.0)
        inv_s = jax.lax.rsqrt(var_s + _LN_EPS)
        small = jnp.concatenate([mu_s, inv_s], axis=0)                  # (2L, bt)
        big = jnp.dot(small, bexp_ref[...],
                      preferred_element_type=f32)                       # (2L, lanes)
        return (h - big[:L]) * big[L:] * gamma + beta

    # --- token (spatial) mixing ---------------------------------------------
    res1 = x
    h = layer_norm(x, g1_ref[...], be1_ref[...])
    hm = h.astype(bf16) * mskb          # == (h * mask).astype(bf16) for 0/1 mask
    h = jnp.dot(w1t_ref[...], hm, preferred_element_type=f32) + b1_ref[...]
    h = _gelu_tanh(h)
    hm = h.astype(bf16) * mskb
    h = jnp.dot(w2t_ref[...], hm, preferred_element_type=f32) + b2_ref[...]
    h = h + res1

    # --- channel mixing -------------------------------------------------------
    res2 = h
    h = layer_norm(h, g2_ref[...], be2_ref[...])
    h = jnp.dot(h.astype(bf16), c1_ref[...],
                preferred_element_type=f32) + bc1_ref[...]
    h = _gelu_tanh(h)
    h = jnp.dot(h.astype(bf16), c2_ref[...],
                preferred_element_type=f32) + bc2_ref[...]
    o_ref[...] = (h + res2).astype(o_ref.dtype)


def _round_up(v, m):
    return -(-v // m) * m


def _chip_tuning():
    """(mxu_lane_cap, min_grid_steps, vmem_cap_bytes) per TPU generation."""
    try:
        kind = jax.devices()[0].device_kind.lower()
    except Exception:
        kind = ""
    if "v7" in kind:
        # 2 TensorCores (want >=2 parallel grid steps), 64 MiB VMEM, 256-wide MXU.
        return 256, 2, 48 << 20
    if any(t in kind for t in ("v2", "v3", "v4", "v5")):
        # 128-wide MXU, 1 TensorCore, 128 MiB physical VMEM.
        return 128, 1, 100 << 20
    # v6e / unknown default: 256-wide MXU, 1 TensorCore, 128 MiB VMEM.
    return 256, 1, 100 << 20


def mixer_layer(x, mask, params):
    """x: (B, L, D) float32, mask: (B, L) float, params: MixerLayer parameters."""
    B, L, D = x.shape
    (g1, be1, w1, b1, w2, b2, g2, be2, wc1, bc1, wc2, bc2) = params
    f32, bf16 = jnp.float32, jnp.bfloat16

    lane_cap, min_steps, vmem_cap = _chip_tuning()

    # --- channel padding: keep the lane tile MXU-friendly for awkward D -------
    # Zero-padded channels never contaminate real ones (zero weight rows/cols,
    # zero gamma/beta, segment-sum matrix ignores padded rows) and are sliced
    # away at the end.
    def lane_floor(d):
        return (128 // math.gcd(d, 128)) * d
    cands = {D, _round_up(D, 32), _round_up(D, 64), _round_up(D, 128)}
    Dp = min(cands, key=lambda d: (lane_floor(d), d))

    # --- batch tiling: fold batch onto the lane axis --------------------------
    bt0 = 128 // math.gcd(Dp, 128)       # smallest tile with lane width % 128 == 0
    b_pad = _round_up(B, bt0)
    bt = bt0
    # Grow the tile while (a) lanes stay at/below the MXU-native width and
    # (b) on 2-TensorCore chips at least `min_steps` grid steps remain.
    while (bt * 2 * Dp <= lane_cap and b_pad % (bt * 2) == 0
           and b_pad // (bt * 2) >= min_steps):
        bt *= 2
    steps = b_pad // bt
    lanes = bt * Dp

    xp = x.astype(f32)
    if Dp != D:
        xp = jnp.pad(xp, ((0, 0), (0, 0), (0, Dp - D)))
    mp = mask.astype(bf16)               # mask is exactly 0/1 -> bf16 is exact
    if b_pad != B:
        xp = jnp.pad(xp, ((0, b_pad - B), (0, 0), (0, 0)))
        mp = jnp.pad(mp, ((0, b_pad - B), (0, 0)))

    # Lane-dense slabs (layout plumbing done in XLA, outside the kernel).
    xs = jnp.transpose(xp, (1, 0, 2)).reshape(L, b_pad * Dp)
    ms = jnp.broadcast_to(mp.T[:, :, None], (L, b_pad, Dp)).reshape(L, b_pad * Dp)

    def pad_vec(v):
        return jnp.pad(v.astype(f32), (0, Dp - D))

    def pad_mat(w):
        return jnp.pad(w.astype(f32), ((0, Dp - D), (0, Dp - D)))

    eye = jnp.eye(bt, dtype=f32)
    # Segment-sum matrix (lanes, bt): 1/D on real-channel rows, 0 on padded rows.
    seg = jnp.concatenate([jnp.full((D, 1), 1.0 / D, f32),
                           jnp.zeros((Dp - D, 1), f32)], axis=0)
    ssum = jnp.kron(eye, seg)                              # (lanes, bt)
    bexp = jnp.kron(eye, jnp.ones((1, Dp), f32))           # (bt, lanes) 0/1
    c1 = jnp.kron(eye, pad_mat(wc1).T).astype(bf16)        # blockdiag(Wc1^T)
    c2 = jnp.kron(eye, pad_mat(wc2).T).astype(bf16)        # blockdiag(Wc2^T)

    def tile_lanes(v):                   # (D,) -> (1, lanes), repeated per batch
        return jnp.tile(pad_vec(v), bt).reshape(1, lanes)

    args = (
        xs, ms, ssum, bexp,
        tile_lanes(g1), tile_lanes(be1),
        w1.T.astype(bf16), b1.astype(f32).reshape(L, 1),
        w2.T.astype(bf16), b2.astype(f32).reshape(L, 1),
        tile_lanes(g2), tile_lanes(be2),
        c1, tile_lanes(bc1),
        c2, tile_lanes(bc2),
    )

    def full_spec(a):
        nd = a.ndim
        return pl.BlockSpec(a.shape, lambda i, _nd=nd: (0,) * _nd)

    # Grid-invariant weights use constant index maps (no per-step re-DMA); at
    # the capped lane width their double-buffer footprint is well under 1 MiB,
    # so forcing single-buffering is not worth extra constraints here.
    in_specs = [
        pl.BlockSpec((L, lanes), lambda i: (0, i)),   # x slab: one batch tile
        pl.BlockSpec((L, lanes), lambda i: (0, i)),   # bf16 mask slab
    ] + [full_spec(a) for a in args[2:]]

    # --- VMEM budget (per generation) & cost estimate -------------------------
    weight_bytes = sum(int(a.size) * a.dtype.itemsize for a in args[2:])
    tile_bytes = L * lanes * (4 + 2 + 4)              # x + mask + out tiles
    vmem_limit = int(min(max(2 * tile_bytes + 2 * weight_bytes
                             + 8 * L * lanes * 4 + (4 << 20), 16 << 20),
                         vmem_cap))

    flops_per_step = (16 * L * lanes * bt        # 2x LN (fused stat + broadcast)
                      + 4 * L * L * lanes        # 2x spatial-mix matmuls
                      + 4 * L * lanes * lanes    # 2x block-diag channel matmuls
                      + 30 * L * lanes)          # elementwise
    cost = pl.CostEstimate(
        flops=int(steps * flops_per_step),
        transcendentals=int(steps * (2 * L * lanes + 2 * L * bt)),
        bytes_accessed=int(4 * xs.size + 2 * ms.size + 4 * xs.size
                           + weight_bytes))      # weights resident: counted once

    # NOTE: for very large L (2*L^2 bf16 spatial weights nearing the VMEM
    # budget) the spatial matmuls would need an extra reduction grid axis with a
    # pl.when-initialized accumulator; not required at these shapes.
    out = pl.pallas_call(
        mixer_kernel,
        out_shape=jax.ShapeDtypeStruct((L, b_pad * Dp), f32),
        grid_spec=pltpu.PrefetchScalarGridSpec(
            num_scalar_prefetch=0,
            grid=(steps,),
            in_specs=in_specs,
            out_specs=pl.BlockSpec((L, lanes), lambda i: (0, i)),
        ),
        compiler_params=pltpu.CompilerParams(
            dimension_semantics=("parallel",),
            vmem_limit_bytes=vmem_limit),
        cost_estimate=cost,
    )(*args)

    # Back to (B, L, D), dropping batch and channel padding.
    return jnp.transpose(out.reshape(L, b_pad, Dp), (1, 0, 2))[:B, :, :D]


# TODO(synk): SpatialLinear(toeplitz=True) builds its (L, L) weight from a
# 2L-1 parameter vector; only the default toeplitz=False path is implemented.


def mixer_reference(x, mask, params):
    """Pure-JAX reference mirroring the PyTorch module (exact erf GELU, f32)."""
    (g1, be1, w1, b1, w2, b2, g2, be2, wc1, bc1, wc2, bc2) = params

    def ln(h, g, b):
        mu = jnp.mean(h, -1, keepdims=True)
        var = jnp.mean((h - mu) ** 2, -1, keepdims=True)
        return (h - mu) / jnp.sqrt(var + _LN_EPS) * g + b

    def spatial(h, w, b):
        hm = h * mask[:, :, None]
        return jnp.einsum('bmd,ml->bld', hm, w) + b[None, :, None]

    gelu = lambda v: jax.nn.gelu(v, approximate=False)

    res1 = x
    h = ln(x, g1, be1)
    h = spatial(h, w1, b1)
    h = gelu(h)
    h = spatial(h, w2, b2)
    h = h + res1
    res2 = h
    h = ln(h, g2, be2)
    h = h @ wc1.T + bc1
    h = gelu(h)
    h = h @ wc2.T + bc2
    return h + res2


if __name__ == "__main__":
    # channel_dim = D, spatial_dim = L (toeplitz=False path)
    B, L, D = 2, 16, 32

    key = jax.random.PRNGKey(0)
    ks = jax.random.split(key, 10)

    x = jax.random.normal(ks[0], (B, L, D), jnp.float32)
    lengths = jnp.array([L, L - 5])
    mask = (jnp.arange(L)[None, :] < lengths[:, None]).astype(jnp.float32)

    # Parameter init following MixerLayer.__init__ shapes:
    g1 = jnp.ones((D,), jnp.float32)
    be1 = jnp.zeros((D,), jnp.float32)
    g2 = jnp.ones((D,), jnp.float32)
    be2 = jnp.zeros((D,), jnp.float32)
    w1 = jax.random.normal(ks[1], (L, L), jnp.float32)
    b1 = jax.random.normal(ks[2], (L,), jnp.float32)
    w2 = jax.random.normal(ks[3], (L, L), jnp.float32)
    b2 = jax.random.normal(ks[4], (L,), jnp.float32)
    lim = 1.0 / math.sqrt(D)
    wc1 = jax.random.uniform(ks[5], (D, D), jnp.float32, -lim, lim)
    bc1 = jax.random.uniform(ks[6], (D,), jnp.float32, -lim, lim)
    wc2 = jax.random.uniform(ks[7], (D, D), jnp.float32, -lim, lim)
    bc2 = jax.random.uniform(ks[8], (D,), jnp.float32, -lim, lim)

    params = (g1, be1, w1, b1, w2, b2, g2, be2, wc1, bc1, wc2, bc2)

    out = jax.block_until_ready(mixer_layer(x, mask, params))
    ref = mixer_reference(x, mask, params)

    assert out.shape == (B, L, D), out.shape
    assert bool(jnp.all(jnp.isfinite(out)))
    scale = float(jnp.max(jnp.abs(ref)))
    max_err = float(jnp.max(jnp.abs(out - ref)))
    # bf16 MXU operands + tanh-approx GELU => scale-relative tolerance vs the
    # exact f32/erf reference (structural bugs produce O(scale) errors).
    assert max_err <= 5e-2 * scale + 1e-2, (max_err, scale)

    print("KERNEL_OK")
</pallas_src>

<mosaic_0001>
module attributes {stable_mosaic.version = 11 : i64} {
  func.func @mixer_kernel(%arg0: i32, %arg1: memref<16x128xf32, #tpu.memory_space<vmem>>, %arg2: memref<16x128xbf16, #tpu.memory_space<vmem>>, %arg3: memref<128x4xf32, #tpu.memory_space<vmem>>, %arg4: memref<4x128xf32, #tpu.memory_space<vmem>>, %arg5: memref<1x128xf32, #tpu.memory_space<vmem>>, %arg6: memref<1x128xf32, #tpu.memory_space<vmem>>, %arg7: memref<16x16xbf16, #tpu.memory_space<vmem>>, %arg8: memref<16x1xf32, #tpu.memory_space<vmem>>, %arg9: memref<16x16xbf16, #tpu.memory_space<vmem>>, %arg10: memref<16x1xf32, #tpu.memory_space<vmem>>, %arg11: memref<1x128xf32, #tpu.memory_space<vmem>>, %arg12: memref<1x128xf32, #tpu.memory_space<vmem>>, %arg13: memref<128x128xbf16, #tpu.memory_space<vmem>>, %arg14: memref<1x128xf32, #tpu.memory_space<vmem>>, %arg15: memref<128x128xbf16, #tpu.memory_space<vmem>>, %arg16: memref<1x128xf32, #tpu.memory_space<vmem>>, %arg17: memref<16x128xf32, #tpu.memory_space<vmem>>) attributes {dimension_semantics = [#tpu.dimension_semantics<parallel>], iteration_bounds = array<i64: 1>, scalar_prefetch = 0 : i64, scratch_operands = 0 : i64, tpu.core_type = #tpu.core_type<tc>, window_params = [{transform_indices = @transform_0, window_bounds = array<i64: 16, 128>}, {transform_indices = @transform_1, window_bounds = array<i64: 16, 128>}, {pipeline_mode = #tpu.pipeline_mode<synchronous>, transform_indices = @transform_2, window_bounds = array<i64: 128, 4>}, {pipeline_mode = #tpu.pipeline_mode<synchronous>, transform_indices = @transform_3, window_bounds = array<i64: 4, 128>}, {pipeline_mode = #tpu.pipeline_mode<synchronous>, transform_indices = @transform_4, window_bounds = array<i64: 1, 128>}, {pipeline_mode = #tpu.pipeline_mode<synchronous>, transform_indices = @transform_5, window_bounds = array<i64: 1, 128>}, {pipeline_mode = #tpu.pipeline_mode<synchronous>, transform_indices = @transform_6, window_bounds = array<i64: 16, 16>}, {pipeline_mode = #tpu.pipeline_mode<synchronous>, transform_indices = @transform_7, window_bounds = array<i64: 16, 1>}, {pipeline_mode = #tpu.pipeline_mode<synchronous>, transform_indices = @transform_8, window_bounds = array<i64: 16, 16>}, {pipeline_mode = #tpu.pipeline_mode<synchronous>, transform_indices = @transform_9, window_bounds = array<i64: 16, 1>}, {pipeline_mode = #tpu.pipeline_mode<synchronous>, transform_indices = @transform_10, window_bounds = array<i64: 1, 128>}, {pipeline_mode = #tpu.pipeline_mode<synchronous>, transform_indices = @transform_11, window_bounds = array<i64: 1, 128>}, {pipeline_mode = #tpu.pipeline_mode<synchronous>, transform_indices = @transform_12, window_bounds = array<i64: 128, 128>}, {pipeline_mode = #tpu.pipeline_mode<synchronous>, transform_indices = @transform_13, window_bounds = array<i64: 1, 128>}, {pipeline_mode = #tpu.pipeline_mode<synchronous>, transform_indices = @transform_14, window_bounds = array<i64: 128, 128>}, {pipeline_mode = #tpu.pipeline_mode<synchronous>, transform_indices = @transform_15, window_bounds = array<i64: 1, 128>}, {transform_indices = @transform_16, window_bounds = array<i64: 16, 128>}]} {
    %c0 = arith.constant 0 : index
    %c0_0 = arith.constant 0 : index
    %0 = vector.load %arg1[%c0, %c0_0] : memref<16x128xf32, #tpu.memory_space<vmem>>, vector<16x128xf32>
    %c0_1 = arith.constant 0 : index
    %c0_2 = arith.constant 0 : index
    %1 = vector.load %arg2[%c0_1, %c0_2] : memref<16x128xbf16, #tpu.memory_space<vmem>>, vector<16x128xbf16>
    %c0_3 = arith.constant 0 : index
    %c0_4 = arith.constant 0 : index
    %2 = vector.load %arg5[%c0_3, %c0_4] : memref<1x128xf32, #tpu.memory_space<vmem>>, vector<1x128xf32>
    %c0_5 = arith.constant 0 : index
    %c0_6 = arith.constant 0 : index
    %3 = vector.load %arg6[%c0_5, %c0_6] : memref<1x128xf32, #tpu.memory_space<vmem>>, vector<1x128xf32>
    %4 = arith.mulf %0, %0 : vector<16x128xf32>
    %5 = tpu.concatenate %0, %4 in 0 : vector<16x128xf32>, vector<16x128xf32> -> vector<32x128xf32>
    %c0_7 = arith.constant 0 : index
    %c0_8 = arith.constant 0 : index
    %6 = vector.load %arg3[%c0_7, %c0_8] : memref<128x4xf32, #tpu.memory_space<vmem>>, vector<128x4xf32>
    %cst = arith.constant dense<0.000000e+00> : vector<32x4xf32>
    %7 = tpu.matmul %5, %6, %cst {dimension_numbers = #tpu.dot_dimension_numbers<[1], [0], [0], [1], [0, 0, 1, 1], [], []>} : vector<32x128xf32>, vector<128x4xf32>, vector<32x4xf32> -> vector<32x4xf32>
    %8 = vector.extract_strided_slice %7 {offsets = [0, 0], sizes = [16, 4], strides = [1, 1]} : vector<32x4xf32> to vector<16x4xf32>
    %9 = vector.extract_strided_slice %7 {offsets = [16, 0], sizes = [16, 4], strides = [1, 1]} : vector<32x4xf32> to vector<16x4xf32>
    %10 = arith.mulf %8, %8 : vector<16x4xf32>
    %11 = arith.subf %9, %10 : vector<16x4xf32>
    %cst_9 = arith.constant 0.000000e+00 : f32
    %12 = vector.broadcast %cst_9 : f32 to vector<16x4xf32>
    %13 = arith.maximumf %11, %12 : vector<16x4xf32>
    %cst_10 = arith.constant 9.99999974E-6 : f32
    %14 = vector.broadcast %cst_10 : f32 to vector<16x4xf32>
    %15 = arith.addf %13, %14 : vector<16x4xf32>
    %16 = math.rsqrt %15 : vector<16x4xf32>
    %17 = tpu.concatenate %8, %16 in 0 : vector<16x4xf32>, vector<16x4xf32> -> vector<32x4xf32>
    %c0_11 = arith.constant 0 : index
    %c0_12 = arith.constant 0 : index
    %18 = vector.load %arg4[%c0_11, %c0_12] : memref<4x128xf32, #tpu.memory_space<vmem>>, vector<4x128xf32>
    %cst_13 = arith.constant dense<0.000000e+00> : vector<32x128xf32>
    %19 = tpu.matmul %17, %18, %cst_13 {dimension_numbers = #tpu.dot_dimension_numbers<[1], [0], [0], [1], [0, 0, 1, 1], [], []>} : vector<32x4xf32>, vector<4x128xf32>, vector<32x128xf32> -> vector<32x128xf32>
    %20 = vector.extract_strided_slice %19 {offsets = [0, 0], sizes = [16, 128], strides = [1, 1]} : vector<32x128xf32> to vector<16x128xf32>
    %21 = arith.subf %0, %20 : vector<16x128xf32>
    %22 = vector.extract_strided_slice %19 {offsets = [16, 0], sizes = [16, 128], strides = [1, 1]} : vector<32x128xf32> to vector<16x128xf32>
    %23 = arith.mulf %21, %22 : vector<16x128xf32>
    %24 = vector.broadcast %2 : vector<1x128xf32> to vector<16x128xf32>
    %25 = arith.mulf %23, %24 : vector<16x128xf32>
    %26 = vector.broadcast %3 : vector<1x128xf32> to vector<16x128xf32>
    %27 = arith.addf %25, %26 : vector<16x128xf32>
    %28 = arith.truncf %27 : vector<16x128xf32> to vector<16x128xbf16>
    %29 = arith.mulf %28, %1 : vector<16x128xbf16>
    %c0_14 = arith.constant 0 : index
    %c0_15 = arith.constant 0 : index
    %30 = vector.load %arg7[%c0_14, %c0_15] : memref<16x16xbf16, #tpu.memory_space<vmem>>, vector<16x16xbf16>
    %cst_16 = arith.constant dense<0.000000e+00> : vector<16x128xf32>
    %31 = tpu.matmul %30, %29, %cst_16 {dimension_numbers = #tpu.dot_dimension_numbers<[1], [0], [0], [1], [0, 0, 1, 1], [], []>} : vector<16x16xbf16>, vector<16x128xbf16>, vector<16x128xf32> -> vector<16x128xf32>
    %c0_17 = arith.constant 0 : index
    %c0_18 = arith.constant 0 : index
    %32 = vector.load %arg8[%c0_17, %c0_18] : memref<16x1xf32, #tpu.memory_space<vmem>>, vector<16x1xf32>
    %33 = vector.broadcast %32 : vector<16x1xf32> to vector<16x128xf32>
    %34 = arith.addf %31, %33 : vector<16x128xf32>
    %cst_19 = arith.constant 5.000000e-01 : f32
    %35 = vector.broadcast %cst_19 : f32 to vector<16x128xf32>
    %36 = arith.mulf %35, %34 : vector<16x128xf32>
    %cst_20 = arith.constant 4.471500e-02 : f32
    %37 = vector.broadcast %cst_20 : f32 to vector<16x128xf32>
    %38 = arith.mulf %37, %34 : vector<16x128xf32>
    %39 = arith.mulf %38, %34 : vector<16x128xf32>
    %40 = arith.mulf %39, %34 : vector<16x128xf32>
    %41 = arith.addf %34, %40 : vector<16x128xf32>
    %cst_21 = arith.constant 0.797884583 : f32
    %42 = vector.broadcast %cst_21 : f32 to vector<16x128xf32>
    %43 = arith.mulf %42, %41 : vector<16x128xf32>
    %44 = math.tanh %43 : vector<16x128xf32>
    %cst_22 = arith.constant 1.000000e+00 : f32
    %45 = vector.broadcast %cst_22 : f32 to vector<16x128xf32>
    %46 = arith.addf %45, %44 : vector<16x128xf32>
    %47 = arith.mulf %36, %46 : vector<16x128xf32>
    %48 = arith.truncf %47 : vector<16x128xf32> to vector<16x128xbf16>
    %49 = arith.mulf %48, %1 : vector<16x128xbf16>
    %c0_23 = arith.constant 0 : index
    %c0_24 = arith.constant 0 : index
    %50 = vector.load %arg9[%c0_23, %c0_24] : memref<16x16xbf16, #tpu.memory_space<vmem>>, vector<16x16xbf16>
    %cst_25 = arith.constant dense<0.000000e+00> : vector<16x128xf32>
    %51 = tpu.matmul %50, %49, %cst_25 {dimension_numbers = #tpu.dot_dimension_numbers<[1], [0], [0], [1], [0, 0, 1, 1], [], []>} : vector<16x16xbf16>, vector<16x128xbf16>, vector<16x128xf32> -> vector<16x128xf32>
    %c0_26 = arith.constant 0 : index
    %c0_27 = arith.constant 0 : index
    %52 = vector.load %arg10[%c0_26, %c0_27] : memref<16x1xf32, #tpu.memory_space<vmem>>, vector<16x1xf32>
    %53 = vector.broadcast %52 : vector<16x1xf32> to vector<16x128xf32>
    %54 = arith.addf %51, %53 : vector<16x128xf32>
    %55 = arith.addf %54, %0 : vector<16x128xf32>
    %c0_28 = arith.constant 0 : index
    %c0_29 = arith.constant 0 : index
    %56 = vector.load %arg11[%c0_28, %c0_29] : memref<1x128xf32, #tpu.memory_space<vmem>>, vector<1x128xf32>
    %c0_30 = arith.constant 0 : index
    %c0_31 = arith.constant 0 : index
    %57 = vector.load %arg12[%c0_30, %c0_31] : memref<1x128xf32, #tpu.memory_space<vmem>>, vector<1x128xf32>
    %58 = arith.mulf %55, %55 : vector<16x128xf32>
    %59 = tpu.concatenate %55, %58 in 0 : vector<16x128xf32>, vector<16x128xf32> -> vector<32x128xf32>
    %c0_32 = arith.constant 0 : index
    %c0_33 = arith.constant 0 : index
    %60 = vector.load %arg3[%c0_32, %c0_33] : memref<128x4xf32, #tpu.memory_space<vmem>>, vector<128x4xf32>
    %cst_34 = arith.constant dense<0.000000e+00> : vector<32x4xf32>
    %61 = tpu.matmul %59, %60, %cst_34 {dimension_numbers = #tpu.dot_dimension_numbers<[1], [0], [0], [1], [0, 0, 1, 1], [], []>} : vector<32x128xf32>, vector<128x4xf32>, vector<32x4xf32> -> vector<32x4xf32>
    %62 = vector.extract_strided_slice %61 {offsets = [0, 0], sizes = [16, 4], strides = [1, 1]} : vector<32x4xf32> to vector<16x4xf32>
    %63 = vector.extract_strided_slice %61 {offsets = [16, 0], sizes = [16, 4], strides = [1, 1]} : vector<32x4xf32> to vector<16x4xf32>
    %64 = arith.mulf %62, %62 : vector<16x4xf32>
    %65 = arith.subf %63, %64 : vector<16x4xf32>
    %cst_35 = arith.constant 0.000000e+00 : f32
    %66 = vector.broadcast %cst_35 : f32 to vector<16x4xf32>
    %67 = arith.maximumf %65, %66 : vector<16x4xf32>
    %cst_36 = arith.constant 9.99999974E-6 : f32
    %68 = vector.broadcast %cst_36 : f32 to vector<16x4xf32>
    %69 = arith.addf %67, %68 : vector<16x4xf32>
    %70 = math.rsqrt %69 : vector<16x4xf32>
    %71 = tpu.concatenate %62, %70 in 0 : vector<16x4xf32>, vector<16x4xf32> -> vector<32x4xf32>
    %c0_37 = arith.constant 0 : index
    %c0_38 = arith.constant 0 : index
    %72 = vector.load %arg4[%c0_37, %c0_38] : memref<4x128xf32, #tpu.memory_space<vmem>>, vector<4x128xf32>
    %cst_39 = arith.constant dense<0.000000e+00> : vector<32x128xf32>
    %73 = tpu.matmul %71, %72, %cst_39 {dimension_numbers = #tpu.dot_dimension_numbers<[1], [0], [0], [1], [0, 0, 1, 1], [], []>} : vector<32x4xf32>, vector<4x128xf32>, vector<32x128xf32> -> vector<32x128xf32>
    %74 = vector.extract_strided_slice %73 {offsets = [0, 0], sizes = [16, 128], strides = [1, 1]} : vector<32x128xf32> to vector<16x128xf32>
    %75 = arith.subf %55, %74 : vector<16x128xf32>
    %76 = vector.extract_strided_slice %73 {offsets = [16, 0], sizes = [16, 128], strides = [1, 1]} : vector<32x128xf32> to vector<16x128xf32>
    %77 = arith.mulf %75, %76 : vector<16x128xf32>
    %78 = vector.broadcast %56 : vector<1x128xf32> to vector<16x128xf32>
    %79 = arith.mulf %77, %78 : vector<16x128xf32>
    %80 = vector.broadcast %57 : vector<1x128xf32> to vector<16x128xf32>
    %81 = arith.addf %79, %80 : vector<16x128xf32>
    %82 = arith.truncf %81 : vector<16x128xf32> to vector<16x128xbf16>
    %c0_40 = arith.constant 0 : index
    %c0_41 = arith.constant 0 : index
    %83 = vector.load %arg13[%c0_40, %c0_41] : memref<128x128xbf16, #tpu.memory_space<vmem>>, vector<128x128xbf16>
    %cst_42 = arith.constant dense<0.000000e+00> : vector<16x128xf32>
    %84 = tpu.matmul %82, %83, %cst_42 {dimension_numbers = #tpu.dot_dimension_numbers<[1], [0], [0], [1], [0, 0, 1, 1], [], []>} : vector<16x128xbf16>, vector<128x128xbf16>, vector<16x128xf32> -> vector<16x128xf32>
    %c0_43 = arith.constant 0 : index
    %c0_44 = arith.constant 0 : index
    %85 = vector.load %arg14[%c0_43, %c0_44] : memref<1x128xf32, #tpu.memory_space<vmem>>, vector<1x128xf32>
    %86 = vector.broadcast %85 : vector<1x128xf32> to vector<16x128xf32>
    %87 = arith.addf %84, %86 : vector<16x128xf32>
    %cst_45 = arith.constant 5.000000e-01 : f32
    %88 = vector.broadcast %cst_45 : f32 to vector<16x128xf32>
    %89 = arith.mulf %88, %87 : vector<16x128xf32>
    %cst_46 = arith.constant 4.471500e-02 : f32
    %90 = vector.broadcast %cst_46 : f32 to vector<16x128xf32>
    %91 = arith.mulf %90, %87 : vector<16x128xf32>
    %92 = arith.mulf %91, %87 : vector<16x128xf32>
    %93 = arith.mulf %92, %87 : vector<16x128xf32>
    %94 = arith.addf %87, %93 : vector<16x128xf32>
    %cst_47 = arith.constant 0.797884583 : f32
    %95 = vector.broadcast %cst_47 : f32 to vector<16x128xf32>
    %96 = arith.mulf %95, %94 : vector<16x128xf32>
    %97 = math.tanh %96 : vector<16x128xf32>
    %cst_48 = arith.constant 1.000000e+00 : f32
    %98 = vector.broadcast %cst_48 : f32 to vector<16x128xf32>
    %99 = arith.addf %98, %97 : vector<16x128xf32>
    %100 = arith.mulf %89, %99 : vector<16x128xf32>
    %101 = arith.truncf %100 : vector<16x128xf32> to vector<16x128xbf16>
    %c0_49 = arith.constant 0 : index
    %c0_50 = arith.constant 0 : index
    %102 = vector.load %arg15[%c0_49, %c0_50] : memref<128x128xbf16, #tpu.memory_space<vmem>>, vector<128x128xbf16>
    %cst_51 = arith.constant dense<0.000000e+00> : vector<16x128xf32>
    %103 = tpu.matmul %101, %102, %cst_51 {dimension_numbers = #tpu.dot_dimension_numbers<[1], [0], [0], [1], [0, 0, 1, 1], [], []>} : vector<16x128xbf16>, vector<128x128xbf16>, vector<16x128xf32> -> vector<16x128xf32>
    %c0_52 = arith.constant 0 : index
    %c0_53 = arith.constant 0 : index
    %104 = vector.load %arg16[%c0_52, %c0_53] : memref<1x128xf32, #tpu.memory_space<vmem>>, vector<1x128xf32>
    %105 = vector.broadcast %104 : vector<1x128xf32> to vector<16x128xf32>
    %106 = arith.addf %103, %105 : vector<16x128xf32>
    %107 = arith.addf %106, %55 : vector<16x128xf32>
    %c0_54 = arith.constant 0 : index
    %c0_55 = arith.constant 0 : index
    %108 = vector.load %arg17[%c0_54, %c0_55] : memref<16x128xf32, #tpu.memory_space<vmem>>, vector<16x128xf32>
    tpu.vector_store %arg17[%c0_54, %c0_55], %107 {strides = array<i32>} : memref<16x128xf32, #tpu.memory_space<vmem>>, vector<16x128xf32>,
    return
  }
  func.func @transform_0(%arg0: i32) -> (i32, i32) {
    %c0_i32 = arith.constant 0 : i32
    %c0_i32_0 = arith.constant 0 : i32
    return %c0_i32, %arg0 : i32, i32
  }
  func.func @transform_1(%arg0: i32) -> (i32, i32) {
    %c0_i32 = arith.constant 0 : i32
    %c0_i32_0 = arith.constant 0 : i32
    return %c0_i32, %arg0 : i32, i32
  }
  func.func @transform_2(%arg0: i32) -> (i32, i32) {
    %c0_i32 = arith.constant 0 : i32
    %c0_i32_0 = arith.constant 0 : i32
    %c0_i32_1 = arith.constant 0 : i32
    return %c0_i32, %c0_i32_0 : i32, i32
  }
  func.func @transform_3(%arg0: i32) -> (i32, i32) {
    %c0_i32 = arith.constant 0 : i32
    %c0_i32_0 = arith.constant 0 : i32
    %c0_i32_1 = arith.constant 0 : i32
    return %c0_i32, %c0_i32_0 : i32, i32
  }
  func.func @transform_4(%arg0: i32) -> (i32, i32) {
    %c0_i32 = arith.constant 0 : i32
    %c0_i32_0 = arith.constant 0 : i32
    %c0_i32_1 = arith.constant 0 : i32
    return %c0_i32, %c0_i32_0 : i32, i32
  }
  func.func @transform_5(%arg0: i32) -> (i32, i32) {
    %c0_i32 = arith.constant 0 : i32
    %c0_i32_0 = arith.constant 0 : i32
    %c0_i32_1 = arith.constant 0 : i32
    return %c0_i32, %c0_i32_0 : i32, i32
  }
  func.func @transform_6(%arg0: i32) -> (i32, i32) {
    %c0_i32 = arith.constant 0 : i32
    %c0_i32_0 = arith.constant 0 : i32
    %c0_i32_1 = arith.constant 0 : i32
    return %c0_i32, %c0_i32_0 : i32, i32
  }
  func.func @transform_7(%arg0: i32) -> (i32, i32) {
    %c0_i32 = arith.constant 0 : i32
    %c0_i32_0 = arith.constant 0 : i32
    %c0_i32_1 = arith.constant 0 : i32
    return %c0_i32, %c0_i32_0 : i32, i32
  }
  func.func @transform_8(%arg0: i32) -> (i32, i32) {
    %c0_i32 = arith.constant 0 : i32
    %c0_i32_0 = arith.constant 0 : i32
    %c0_i32_1 = arith.constant 0 : i32
    return %c0_i32, %c0_i32_0 : i32, i32
  }
  func.func @transform_9(%arg0: i32) -> (i32, i32) {
    %c0_i32 = arith.constant 0 : i32
    %c0_i32_0 = arith.constant 0 : i32
    %c0_i32_1 = arith.constant 0 : i32
    return %c0_i32, %c0_i32_0 : i32, i32
  }
  func.func @transform_10(%arg0: i32) -> (i32, i32) {
    %c0_i32 = arith.constant 0 : i32
    %c0_i32_0 = arith.constant 0 : i32
    %c0_i32_1 = arith.constant 0 : i32
    return %c0_i32, %c0_i32_0 : i32, i32
  }
  func.func @transform_11(%arg0: i32) -> (i32, i32) {
    %c0_i32 = arith.constant 0 : i32
    %c0_i32_0 = arith.constant 0 : i32
    %c0_i32_1 = arith.constant 0 : i32
    return %c0_i32, %c0_i32_0 : i32, i32
  }
  func.func @transform_12(%arg0: i32) -> (i32, i32) {
    %c0_i32 = arith.constant 0 : i32
    %c0_i32_0 = arith.constant 0 : i32
    %c0_i32_1 = arith.constant 0 : i32
    return %c0_i32, %c0_i32_0 : i32, i32
  }
  func.func @transform_13(%arg0: i32) -> (i32, i32) {
    %c0_i32 = arith.constant 0 : i32
    %c0_i32_0 = arith.constant 0 : i32
    %c0_i32_1 = arith.constant 0 : i32
    return %c0_i32, %c0_i32_0 : i32, i32
  }
  func.func @transform_14(%arg0: i32) -> (i32, i32) {
    %c0_i32 = arith.constant 0 : i32
    %c0_i32_0 = arith.constant 0 : i32
    %c0_i32_1 = arith.constant 0 : i32
    return %c0_i32, %c0_i32_0 : i32, i32
  }
  func.func @transform_15(%arg0: i32) -> (i32, i32) {
    %c0_i32 = arith.constant 0 : i32
    %c0_i32_0 = arith.constant 0 : i32
    %c0_i32_1 = arith.constant 0 : i32
    return %c0_i32, %c0_i32_0 : i32, i32
  }
  func.func @transform_16(%arg0: i32) -> (i32, i32) {
    %c0_i32 = arith.constant 0 : i32
    %c0_i32_0 = arith.constant 0 : i32
    return %c0_i32, %arg0 : i32, i32
  }
}

</mosaic_0001>

<llo_original>
// kernel: tpu_custom_call.1
$region0: #{tpu_custom_call.1}
  #allocation0 [shape = 'u32[]', space=smem, size = 0x4, offset = 0x4, fixed_abs, tag = 'smem constant byte address 0x4 - core index']
  #allocation1 [shape = 'u32[144,128]{1,0:T(1,128)}', space=vmem, size = 0x12000, scoped, tag = 'internal scratch']
  %s0 = inlined_call_operand.vmem [shape: f32[16,128], index: 0, kind: input, shape index: {}]
  %s1 = inlined_call_operand.vmem [shape: bf16[16,128], index: 1, kind: input, shape index: {}]
  %s2 = inlined_call_operand.vmem [shape: f32[128,4], index: 2, kind: input, shape index: {}]
  %s3 = inlined_call_operand.vmem [shape: f32[4,128], index: 3, kind: input, shape index: {}]
  %s4 = inlined_call_operand.vmem [shape: f32[1,128], index: 4, kind: input, shape index: {}]
  %s5 = inlined_call_operand.vmem [shape: f32[1,128], index: 5, kind: input, shape index: {}]
  %s6 = inlined_call_operand.vmem [shape: bf16[16,16], index: 6, kind: input, shape index: {}]
  %s7 = inlined_call_operand.vmem [shape: f32[16,1], index: 7, kind: input, shape index: {}]
  %s8 = inlined_call_operand.vmem [shape: bf16[16,16], index: 8, kind: input, shape index: {}]
  %s9 = inlined_call_operand.vmem [shape: f32[16,1], index: 9, kind: input, shape index: {}]
  %s10 = inlined_call_operand.vmem [shape: f32[1,128], index: 10, kind: input, shape index: {}]
  %s11 = inlined_call_operand.vmem [shape: f32[1,128], index: 11, kind: input, shape index: {}]
  %s12 = inlined_call_operand.vmem [shape: bf16[128,128], index: 12, kind: input, shape index: {}]
  %s13 = inlined_call_operand.vmem [shape: f32[1,128], index: 13, kind: input, shape index: {}]
  %s14 = inlined_call_operand.vmem [shape: bf16[128,128], index: 14, kind: input, shape index: {}]
  %s15 = inlined_call_operand.vmem [shape: f32[1,128], index: 15, kind: input, shape index: {}]
  %s16 = inlined_call_operand.hbm [shape: f32[16,128], index: 16, kind: output, shape index: {}]
  %s17 = sld [smem:[#allocation0]]
  $region74: #{tpu_custom_call.1} parent=0
    _
  %s19 = ssub.s32 1, %s17
  %s20 = scalar_select 0, %s19, %s17
  $region1: #{tpu_custom_call.1} parent=0
    #allocation2 [shape = 'u8[8192]{0}', space=vmem, size = 0x2000, scoped, tag = 'output window, operand 0, single buffered']
    #allocation3 [shape = 's32[1]{0}', space=sflag, size = 0x4, scoped, tag = 'scoped memory for tpu_custom_call.1']
    %21 = vsyncpa [#allocation3], 0
    // Predicated region
    $region2: #{tpu_custom_call.1} parent=1 // pred_check
      _
    $region3: #{tpu_custom_call.1} parent=1 // pred_check_branch
      %23 = sbr.rel (0) target = $region5
    $region4: #{tpu_custom_call.1} parent=1 // pred_region
      _
    $region5: #{tpu_custom_call.1} parent=1 // pred_fallthru
      _
    // Predicated region
    $region6: #{tpu_custom_call.1} parent=1 // pred_check
      _
    $region7: #{tpu_custom_call.1} parent=1 // pred_check_branch
      %25 = sbr.rel (0) target = $region9
    $region8: #{tpu_custom_call.1} parent=1 // pred_region
      _
    $region9: #{tpu_custom_call.1} parent=1 // pred_fallthru
      _
    // Predicated region
    $region10: #{tpu_custom_call.1} parent=1 // pred_check
      _
    $region11: #{tpu_custom_call.1} parent=1 // pred_check_branch
      %27 = sbr.rel (0) target = $region13
    $region12: #{tpu_custom_call.1} parent=1 // pred_region
      _
    $region13: #{tpu_custom_call.1} parent=1 // pred_fallthru
      _
    // Predicated region
    $region14: #{tpu_custom_call.1} parent=1 // pred_check
      _
    $region15: #{tpu_custom_call.1} parent=1 // pred_check_branch
      %29 = sbr.rel (0) target = $region17
    $region16: #{tpu_custom_call.1} parent=1 // pred_region
      _
    $region17: #{tpu_custom_call.1} parent=1 // pred_fallthru
      _
    // Predicated region
    $region18: #{tpu_custom_call.1} parent=1 // pred_check
      _
    $region19: #{tpu_custom_call.1} parent=1 // pred_check_branch
      %31 = sbr.rel (0) target = $region21
    $region20: #{tpu_custom_call.1} parent=1 // pred_region
      _
    $region21: #{tpu_custom_call.1} parent=1 // pred_fallthru
      _
    // Predicated region
    $region22: #{tpu_custom_call.1} parent=1 // pred_check
      _
    $region23: #{tpu_custom_call.1} parent=1 // pred_check_branch
      %33 = sbr.rel (0) target = $region25
    $region24: #{tpu_custom_call.1} parent=1 // pred_region
      _
    $region25: #{tpu_custom_call.1} parent=1 // pred_fallthru
      _
    // Predicated region
    $region26: #{tpu_custom_call.1} parent=1 // pred_check
      _
    $region27: #{tpu_custom_call.1} parent=1 // pred_check_branch
      %35 = sbr.rel (0) target = $region29
    $region28: #{tpu_custom_call.1} parent=1 // pred_region
      _
    $region29: #{tpu_custom_call.1} parent=1 // pred_fallthru
      _
    // Predicated region
    $region30: #{tpu_custom_call.1} parent=1 // pred_check
      _
    $region31: #{tpu_custom_call.1} parent=1 // pred_check_branch
      %37 = sbr.rel (0) target = $region33
    $region32: #{tpu_custom_call.1} parent=1 // pred_region
      _
    $region33: #{tpu_custom_call.1} parent=1 // pred_fallthru
      _
    // Predicated region
    $region34: #{tpu_custom_call.1} parent=1 // pred_check
      _
    $region35: #{tpu_custom_call.1} parent=1 // pred_check_branch
      %39 = sbr.rel (0) target = $region37
    $region36: #{tpu_custom_call.1} parent=1 // pred_region
      _
    $region37: #{tpu_custom_call.1} parent=1 // pred_fallthru
      _
    // Predicated region
    $region38: #{tpu_custom_call.1} parent=1 // pred_check
      _
    $region39: #{tpu_custom_call.1} parent=1 // pred_check_branch
      %41 = sbr.rel (0) target = $region41
    $region40: #{tpu_custom_call.1} parent=1 // pred_region
      _
    $region41: #{tpu_custom_call.1} parent=1 // pred_fallthru
      _
    // Predicated region
    $region42: #{tpu_custom_call.1} parent=1 // pred_check
      _
    $region43: #{tpu_custom_call.1} parent=1 // pred_check_branch
      %43 = sbr.rel (0) target = $region45
    $region44: #{tpu_custom_call.1} parent=1 // pred_region
      _
    $region45: #{tpu_custom_call.1} parent=1 // pred_fallthru
      _
    // Predicated region
    $region46: #{tpu_custom_call.1} parent=1 // pred_check
      _
    $region47: #{tpu_custom_call.1} parent=1 // pred_check_branch
      %45 = sbr.rel (0) target = $region49
    $region48: #{tpu_custom_call.1} parent=1 // pred_region
      _
    $region49: #{tpu_custom_call.1} parent=1 // pred_fallthru
      _
    // Predicated region
    $region50: #{tpu_custom_call.1} parent=1 // pred_check
      _
    $region51: #{tpu_custom_call.1} parent=1 // pred_check_branch
      %47 = sbr.rel (0) target = $region53
    $region52: #{tpu_custom_call.1} parent=1 // pred_region
      _
    $region53: #{tpu_custom_call.1} parent=1 // pred_fallthru
      _
    // Predicated region
    $region54: #{tpu_custom_call.1} parent=1 // pred_check
      _
    $region55: #{tpu_custom_call.1} parent=1 // pred_check_branch
      %49 = sbr.rel (0) target = $region57
    $region56: #{tpu_custom_call.1} parent=1 // pred_region
      _
    $region57: #{tpu_custom_call.1} parent=1 // pred_fallthru
      _
    // Predicated region
    $region58: #{tpu_custom_call.1} parent=1 // pred_check
      _
    $region59: #{tpu_custom_call.1} parent=1 // pred_check_branch
      %51 = sbr.rel (0) target = $region61
    $region60: #{tpu_custom_call.1} parent=1 // pred_region
      _
    $region61: #{tpu_custom_call.1} parent=1 // pred_fallthru
      _
    // Predicated region
    $region62: #{tpu_custom_call.1} parent=1 // pred_check
      _
    $region63: #{tpu_custom_call.1} parent=1 // pred_check_branch
      %53 = sbr.rel (0) target = $region65
    $region64: #{tpu_custom_call.1} parent=1 // pred_region
      _
    $region65: #{tpu_custom_call.1} parent=1 // pred_fallthru
      _
    %v55 = vld [vmem:[%s0] sm:$0xff]
    %v56 = vld [vmem:[%s0 + $0x8] sm:$0xff]
    %v57 = vld [vmem:[%s1] sm:$0xf]
    %v58 = vld [vmem:[%s1 + $0x4] sm:$0xf]
    %v59 = vld [vmem:[%s4] sm:$0x1]
    %v60 = vld [vmem:[%s5] sm:$0x1]
    %v61 = vmul.f32 %v55, %v55
    %v62 = vmul.f32 %v56, %v56
    %v63 = vld [vmem:[%s2] sm:$0xff]
    %v64 = vld [vmem:[%s2 + $0x8] sm:$0xff]
    %v65 = vld [vmem:[%s2 + $0x10] sm:$0xff]
    %v66 = vld [vmem:[%s2 + $0x18] sm:$0xff]
    %v67 = vld [vmem:[%s2 + $0x20] sm:$0xff]
    %v68 = vld [vmem:[%s2 + $0x28] sm:$0xff]
    %v69 = vld [vmem:[%s2 + $0x30] sm:$0xff]
    %v70 = vld [vmem:[%s2 + $0x38] sm:$0xff]
    %v71 = vld [vmem:[%s2 + $0x40] sm:$0xff]
    %v72 = vld [vmem:[%s2 + $0x48] sm:$0xff]
    %v73 = vld [vmem:[%s2 + $0x50] sm:$0xff]
    %v74 = vld [vmem:[%s2 + $0x58] sm:$0xff]
    %v75 = vld [vmem:[%s2 + $0x60] sm:$0xff]
    %v76 = vld [vmem:[%s2 + $0x68] sm:$0xff]
    %v77 = vld [vmem:[%s2 + $0x70] sm:$0xff]
    %v78 = vld [vmem:[%s2 + $0x78] sm:$0xff]
    %79 = vmatprep.subr.mxu0 0.0
    %80 = vmatpush1.msra.mxu0 %v63
    %81 = vmatprep.subr.mxu0 0.0
    %82 = vmatpush1.msra.mxu0 %v64
    %83 = vmatprep.subr.mxu0 0.0
    %84 = vmatpush1.msra.mxu0 %v65
    %85 = vmatprep.subr.mxu0 0.0
    %86 = vmatpush1.msra.mxu0 %v66
    %87 = vmatprep.subr.mxu0 0.0
    %88 = vmatpush1.msra.mxu0 %v67
    %89 = vmatprep.subr.mxu0 0.0
    %90 = vmatpush1.msra.mxu0 %v68
    %91 = vmatprep.subr.mxu0 0.0
    %92 = vmatpush1.msra.mxu0 %v69
    %93 = vmatprep.subr.mxu0 0.0
    %94 = vmatpush1.msra.mxu0 %v70
    %95 = vmatprep.subr.mxu0 0.0
    %96 = vmatpush1.msra.mxu0 %v71
    %97 = vmatprep.subr.mxu0 0.0
    %98 = vmatpush1.msra.mxu0 %v72
    %99 = vmatprep.subr.mxu0 0.0
    %100 = vmatpush1.msra.mxu0 %v73
    %101 = vmatprep.subr.mxu0 0.0
    %102 = vmatpush1.msra.mxu0 %v74
    %103 = vmatprep.subr.mxu0 0.0
    %104 = vmatpush1.msra.mxu0 %v75
    %105 = vmatprep.subr.mxu0 0.0
    %106 = vmatpush1.msra.mxu0 %v76
    %107 = vmatprep.subr.mxu0 0.0
    %108 = vmatpush1.msra.mxu0 %v77
    %109 = vmatprep.subr.mxu0 0.0
    %110 = vmatpush1.msra.mxu0 %v78
    %111 = vmatprep.subr.mxu0 0.0
    %112 = vmatpush1.msra.mxu0 0.0
    %113 = vmatprep.subr.mxu0 0.0
    %114 = vmatpush1.msra.mxu0 0.0
    %115 = vmatprep.subr.mxu0 0.0
    %116 = vmatpush1.msra.mxu0 0.0
    %117 = vmatprep.subr.mxu0 0.0
    %118 = vmatpush1.msra.mxu0 0.0
    %119 = vmatprep.subr.mxu0 0.0
    %120 = vmatpush1.msra.mxu0 0.0
    %121 = vmatprep.subr.mxu0 0.0
    %122 = vmatpush1.msra.mxu0 0.0
    %123 = vmatprep.subr.mxu0 0.0
    %124 = vmatpush1.msra.mxu0 0.0
    %125 = vmatprep.subr.mxu0 0.0
    %126 = vmatpush1.msra.mxu0 0.0
    %127 = vmatprep.subr.mxu0 0.0
    %128 = vmatpush1.msra.mxu0 0.0
    %129 = vmatprep.subr.mxu0 0.0
    %130 = vmatpush1.msra.mxu0 0.0
    %131 = vmatprep.subr.mxu0 0.0
    %132 = vmatpush1.msra.mxu0 0.0
    %133 = vmatprep.subr.mxu0 0.0
    %134 = vmatpush1.msra.mxu0 0.0
    %135 = vmatprep.subr.mxu0 0.0
    %136 = vmatpush1.msra.mxu0 0.0
    %137 = vmatprep.subr.mxu0 0.0
    %138 = vmatpush1.msra.mxu0 0.0
    %139 = vmatprep.subr.mxu0 0.0
    %140 = vmatpush1.msra.mxu0 0.0
    %141 = vmatprep.subr.mxu0 0.0
    %142 = vmatpush1.msra.mxu0 0.0
    %143 = vmatprep.mubr.f32.mxu0 0.0
    %144 = vmatmul.mubr.f32.gmra.mrb[0].mxu0 %v55
    %v145 = vpop.f32.mrb[0].mxu0
    %v146 = vadd.f32 0.0, %v145
    %v147 = vpop.f32.mrb[0].mxu0
    %148 = vmatprep.mubr.f32.mxu0 0.0
    %149 = vmatmul.mubr.f32.gmra.mrb[0].mxu0 %v56
    %v150 = vpop.f32.mrb[0].mxu0
    %v151 = vadd.f32 0.0, %v150
    %v152 = vpop.f32.mrb[0].mxu0
    %153 = vmatprep.mubr.f32.mxu0 0.0
    %154 = vmatmul.mubr.f32.gmra.mrb[0].mxu0 %v61
    %v155 = vpop.f32.mrb[0].mxu0
    %v156 = vadd.f32 0.0, %v155
    %v157 = vpop.f32.mrb[0].mxu0
    %158 = vmatprep.mubr.f32.mxu0 0.0
    %159 = vmatmul.mubr.f32.gmra.mrb[0].mxu0 %v62
    %v160 = vpop.f32.mrb[0].mxu0
    %v161 = vadd.f32 0.0, %v160
    %v162 = vpop.f32.mrb[0].mxu0
    %163 = vdwg.mxu0
    %v164 = vmul.f32 %v146, %v146
    %v165 = vmul.f32 %v151, %v151
    %v166 = vsub.f32 %v156, %v164
    %v167 = vsub.f32 %v161, %v165
    %v168 = vmax.f32 %v166, 0.0
    %v169 = vmax.f32 %v167, 0.0
    %v170 = vadd.f32 %v168, 1e-05
    %v171 = vadd.f32 %v169, 1e-05
    %v172 = vrsqrt.pop %v170
    %v173 = vrsqrt.pop %v171
    %v174 = vld [vmem:[%s3] sm:$0xf]
    %vm175 = vcmask 31744
    %v177 = vsel %vm175, %v146, 0
    %v180 = vsel %vm175, %v151, 0
    %v183 = vsel %vm175, %v172, 0
    %v186 = vsel %vm175, %v173, 0
    %vm188 = vcmask 1043456
    %v190 = vsel %vm188, %v174, 0
    %192 = vmatprep.subr.mxu0 0.0
    %193 = vmatpush1.msra.mxu0 %v190
    %194 = vmatprep.subr.mxu0 0.0
    %195 = vmatpush1.msra.mxu0 0.0
    %196 = vmatprep.subr.mxu0 0.0
    %197 = vmatpush1.msra.mxu0 0.0
    %198 = vmatprep.subr.mxu0 0.0
    %199 = vmatpush1.msra.mxu0 0.0
    %200 = vmatprep.subr.mxu0 0.0
    %201 = vmatpush1.msra.mxu0 0.0
    %202 = vmatprep.subr.mxu0 0.0
    %203 = vmatpush1.msra.mxu0 0.0
    %204 = vmatprep.subr.mxu0 0.0
    %205 = vmatpush1.msra.mxu0 0.0
    %206 = vmatprep.subr.mxu0 0.0
    %207 = vmatpush1.msra.mxu0 0.0
    %208 = vmatprep.subr.mxu0 0.0
    %209 = vmatpush1.msra.mxu0 0.0
    %210 = vmatprep.subr.mxu0 0.0
    %211 = vmatpush1.msra.mxu0 0.0
    %212 = vmatprep.subr.mxu0 0.0
    %213 = vmatpush1.msra.mxu0 0.0
    %214 = vmatprep.subr.mxu0 0.0
    %215 = vmatpush1.msra.mxu0 0.0
    %216 = vmatprep.subr.mxu0 0.0
    %217 = vmatpush1.msra.mxu0 0.0
    %218 = vmatprep.subr.mxu0 0.0
    %219 = vmatpush1.msra.mxu0 0.0
    %220 = vmatprep.subr.mxu0 0.0
    %221 = vmatpush1.msra.mxu0 0.0
    %222 = vmatprep.subr.mxu0 0.0
    %223 = vmatpush1.msra.mxu0 0.0
    %224 = vmatprep.subr.mxu0 0.0
    %225 = vmatpush1.msra.mxu0 0.0
    %226 = vmatprep.subr.mxu0 0.0
    %227 = vmatpush1.msra.mxu0 0.0
    %228 = vmatprep.subr.mxu0 0.0
    %229 = vmatpush1.msra.mxu0 0.0
    %230 = vmatprep.subr.mxu0 0.0
    %231 = vmatpush1.msra.mxu0 0.0
    %232 = vmatprep.subr.mxu0 0.0
    %233 = vmatpush1.msra.mxu0 0.0
    %234 = vmatprep.subr.mxu0 0.0
    %235 = vmatpush1.msra.mxu0 0.0
    %236 = vmatprep.subr.mxu0 0.0
    %237 = vmatpush1.msra.mxu0 0.0
    %238 = vmatprep.subr.mxu0 0.0
    %239 = vmatpush1.msra.mxu0 0.0
    %240 = vmatprep.subr.mxu0 0.0
    %241 = vmatpush1.msra.mxu0 0.0
    %242 = vmatprep.subr.mxu0 0.0
    %243 = vmatpush1.msra.mxu0 0.0
    %244 = vmatprep.subr.mxu0 0.0
    %245 = vmatpush1.msra.mxu0 0.0
    %246 = vmatprep.subr.mxu0 0.0
    %247 = vmatpush1.msra.mxu0 0.0
    %248 = vmatprep.subr.mxu0 0.0
    %249 = vmatpush1.msra.mxu0 0.0
    %250 = vmatprep.subr.mxu0 0.0
    %251 = vmatpush1.msra.mxu0 0.0
    %252 = vmatprep.subr.mxu0 0.0
    %253 = vmatpush1.msra.mxu0 0.0
    %254 = vmatprep.subr.mxu0 0.0
    %255 = vmatpush1.msra.mxu0 0.0
    %256 = vmatprep.mubr.f32.mxu0 0.0
    %257 = vmatmul.mubr.f32.gmra.mrb[0].mxu0 %v177
    %v258 = vpop.f32.mrb[0].mxu0
    %v259 = vadd.f32 0.0, %v258
    %v260 = vpop.f32.mrb[0].mxu0
    %261 = vmatprep.mubr.f32.mxu0 0.0
    %262 = vmatmul.mubr.f32.gmra.mrb[0].mxu0 %v180
    %v263 = vpop.f32.mrb[0].mxu0
    %v264 = vadd.f32 0.0, %v263
    %v265 = vpop.f32.mrb[0].mxu0
    %266 = vmatprep.mubr.f32.mxu0 0.0
    %267 = vmatmul.mubr.f32.gmra.mrb[0].mxu0 %v183
    %v268 = vpop.f32.mrb[0].mxu0
    %v269 = vadd.f32 0.0, %v268
    %v270 = vpop.f32.mrb[0].mxu0
    %271 = vmatprep.mubr.f32.mxu0 0.0
    %272 = vmatmul.mubr.f32.gmra.mrb[0].mxu0 %v186
    %v273 = vpop.f32.mrb[0].mxu0
    %v274 = vadd.f32 0.0, %v273
    %v275 = vpop.f32.mrb[0].mxu0
    %276 = vdwg.mxu0
    %v277 = vsub.f32 %v55, %v259
    %v278 = vsub.f32 %v56, %v264
    %v279 = vmul.f32 %v277, %v269
    %v280 = vmul.f32 %v278, %v274
    %v282 = vlaneseq
    %v283 = vshrl.u32 %v282, 7
    %v284 = vsub.s32 0, %v283
    %v285 = vrot.slane %v59, %v284
    %v287 = vmul.f32 %v279, %v285
    %v288 = vmul.f32 %v280, %v285
    %v290 = vlaneseq
    %v291 = vshrl.u32 %v290, 7
    %v292 = vsub.s32 0, %v291
    %v293 = vrot.slane %v60, %v292
    %v295 = vadd.f32 %v287, %v293
    %v296 = vadd.f32 %v288, %v293
    %v297 = vpack.c.bf16 %v296, %v295
    %v300 = vunpack.c.l.b16 %v57
    %v301 = vunpack.c.l.b16 %v58
    %v302 = vpack.c.b16 %v301, %v300
    %v304 = vmul.bf16 %v297, %v302
    %v305 = vld [vmem:[%s6] sm:$0xf]
    %v306 = vld [vmem:[%s6 + $0x4] sm:$0xf]
    %v307 = vld [vmem:[%s7] sm:$0xff]
    %v308 = vld [vmem:[%s7 + $0x8] sm:$0xff]
    %310 = vset.pattern.permute.xlu0 0
    %311 = vperm.xlu0 %310, %v307
    %v312 = vpop.permute.xlu0 %311
    %315 = vset.pattern.permute.xlu0 0
    %316 = vperm.xlu0 %315, %v308
    %v317 = vpop.permute.xlu0 %316
    %v321 = vunpack.c.l.b16 %v305
    %v322 = vunpack.c.l.b16 %v306
    %v323 = vpack.c.b16 %v322, %v321
    %vm324 = vcmask 130048
    %v326 = vsel %vm324, %v323, 0
    %328 = vmatprep.subr.bf16.mxu0 0
    %329 = vmatpush1.bf16.msra.mxu0 %v304
    %330 = vmatprep.subr.bf16.mxu0 0
    %331 = vmatpush1.bf16.msra.mxu0 0
    %332 = vmatprep.subr.bf16.mxu0 0
    %333 = vmatpush1.bf16.msra.mxu0 0
    %334 = vmatprep.subr.bf16.mxu0 0
    %335 = vmatpush1.bf16.msra.mxu0 0
    %336 = vmatprep.subr.bf16.mxu0 0
    %337 = vmatpush1.bf16.msra.mxu0 0
    %338 = vmatprep.subr.bf16.mxu0 0
    %339 = vmatpush1.bf16.msra.mxu0 0
    %340 = vmatprep.subr.bf16.mxu0 0
    %341 = vmatpush1.bf16.msra.mxu0 0
    %342 = vmatprep.subr.bf16.mxu0 0
    %343 = vmatpush1.bf16.msra.mxu0 0
    %344 = vmatprep.subr.bf16.mxu0 0
    %345 = vmatpush1.bf16.msra.mxu0 0
    %346 = vmatprep.subr.bf16.mxu0 0
    %347 = vmatpush1.bf16.msra.mxu0 0
    %348 = vmatprep.subr.bf16.mxu0 0
    %349 = vmatpush1.bf16.msra.mxu0 0
    %350 = vmatprep.subr.bf16.mxu0 0
    %351 = vmatpush1.bf16.msra.mxu0 0
    %352 = vmatprep.subr.bf16.mxu0 0
    %353 = vmatpush1.bf16.msra.mxu0 0
    %354 = vmatprep.subr.bf16.mxu0 0
    %355 = vmatpush1.bf16.msra.mxu0 0
    %356 = vmatprep.subr.bf16.mxu0 0
    %357 = vmatpush1.bf16.msra.mxu0 0
    %358 = vmatprep.subr.bf16.mxu0 0
    %359 = vmatpush1.bf16.msra.mxu0 0
    %360 = vmatprep.mubr.bf16.mxu0 0
    %361 = vmatmul.mubr.bf16.gmra.mrb[0].mxu0 %v326
    %v362 = vpop.f32.mrb[0].mxu0
    %v363 = vadd.f32 %v312, %v362
    %v364 = vpop.f32.mrb[0].mxu0
    %v365 = vpop.f32.mrb[0].mxu0
    %v366 = vadd.f32 %v317, %v365
    %v367 = vpop.f32.mrb[0].mxu0
    %368 = vdwg.mxu0
    %v369 = vmul.f32 %v363, 0.5
    %v370 = vmul.f32 %v366, 0.5
    %v371 = vmul.f32 %v363, 0.044715
    %v372 = vmul.f32 %v366, 0.044715
    %v373 = vmul.f32 %v371, %v363
    %v374 = vmul.f32 %v372, %v366
    %v375 = vmul.f32 %v373, %v363
    %v376 = vmul.f32 %v374, %v366
    %v377 = vadd.f32 %v363, %v375
    %v378 = vadd.f32 %v366, %v376
    %v379 = vmul.f32 %v377, 0.7978846
    %v380 = vmul.f32 %v378, 0.7978846
    %v381 = vtanh.pop %v379
    %v382 = vtanh.pop %v380
    %v383 = vadd.f32 %v381, 1.0
    %v384 = vadd.f32 %v382, 1.0
    %v385 = vmul.f32 %v369, %v383
    %v386 = vmul.f32 %v370, %v384
    %v387 = vpack.c.bf16 %v386, %v385
    %v388 = vmul.bf16 %v387, %v302
    %v389 = vld [vmem:[%s8] sm:$0xf]
    %v390 = vld [vmem:[%s8 + $0x4] sm:$0xf]
    %v391 = vld [vmem:[%s9] sm:$0xff]
    %v392 = vld [vmem:[%s9 + $0x8] sm:$0xff]
    %394 = vset.pattern.permute.xlu0 0
    %395 = vperm.xlu0 %394, %v391
    %v396 = vpop.permute.xlu0 %395
    %399 = vset.pattern.permute.xlu0 0
    %400 = vperm.xlu0 %399, %v392
    %v401 = vpop.permute.xlu0 %400
    %v405 = vunpack.c.l.b16 %v389
    %v406 = vunpack.c.l.b16 %v390
    %v407 = vpack.c.b16 %v406, %v405
    %v409 = vsel %vm324, %v407, 0
    %411 = vmatprep.subr.bf16.mxu0 0
    %412 = vmatpush1.bf16.msra.mxu0 %v388
    %413 = vmatprep.subr.bf16.mxu0 0
    %414 = vmatpush1.bf16.msra.mxu0 0
    %415 = vmatprep.subr.bf16.mxu0 0
    %416 = vmatpush1.bf16.msra.mxu0 0
    %417 = vmatprep.subr.bf16.mxu0 0
    %418 = vmatpush1.bf16.msra.mxu0 0
    %419 = vmatprep.subr.bf16.mxu0 0
    %420 = vmatpush1.bf16.msra.mxu0 0
    %421 = vmatprep.subr.bf16.mxu0 0
    %422 = vmatpush1.bf16.msra.mxu0 0
    %423 = vmatprep.subr.bf16.mxu0 0
    %424 = vmatpush1.bf16.msra.mxu0 0
    %425 = vmatprep.subr.bf16.mxu0 0
    %426 = vmatpush1.bf16.msra.mxu0 0
    %427 = vmatprep.subr.bf16.mxu0 0
    %428 = vmatpush1.bf16.msra.mxu0 0
    %429 = vmatprep.subr.bf16.mxu0 0
    %430 = vmatpush1.bf16.msra.mxu0 0
    %431 = vmatprep.subr.bf16.mxu0 0
    %432 = vmatpush1.bf16.msra.mxu0 0
    %433 = vmatprep.subr.bf16.mxu0 0
    %434 = vmatpush1.bf16.msra.mxu0 0
    %435 = vmatprep.subr.bf16.mxu0 0
    %436 = vmatpush1.bf16.msra.mxu0 0
    %437 = vmatprep.subr.bf16.mxu0 0
    %438 = vmatpush1.bf16.msra.mxu0 0
    %439 = vmatprep.subr.bf16.mxu0 0
    %440 = vmatpush1.bf16.msra.mxu0 0
    %441 = vmatprep.subr.bf16.mxu0 0
    %442 = vmatpush1.bf16.msra.mxu0 0
    %443 = vmatprep.mubr.bf16.mxu0 0
    %444 = vmatmul.mubr.bf16.gmra.mrb[0].mxu0 %v409
    %v445 = vpop.f32.mrb[0].mxu0
    %v446 = vadd.f32 %v396, %v445
    %v447 = vpop.f32.mrb[0].mxu0
    %v448 = vpop.f32.mrb[0].mxu0
    %v449 = vadd.f32 %v401, %v448
    %v450 = vpop.f32.mrb[0].mxu0
    %451 = vdwg.mxu0
    %v452 = vadd.f32 %v446, %v55
    %v453 = vadd.f32 %v449, %v56
    %v454 = vld [vmem:[%s10] sm:$0x1]
    %v455 = vld [vmem:[%s11] sm:$0x1]
    %v456 = vmul.f32 %v452, %v452
    %v457 = vmul.f32 %v453, %v453
    %458 = vmatprep.subr.mxu0 0.0
    %459 = vmatpush1.msra.mxu0 %v63
    %460 = vmatprep.subr.mxu0 0.0
    %461 = vmatpush1.msra.mxu0 %v64
    %462 = vmatprep.subr.mxu0 0.0
    %463 = vmatpush1.msra.mxu0 %v65
    %464 = vmatprep.subr.mxu0 0.0
    %465 = vmatpush1.msra.mxu0 %v66
    %466 = vmatprep.subr.mxu0 0.0
    %467 = vmatpush1.msra.mxu0 %v67
    %468 = vmatprep.subr.mxu0 0.0
    %469 = vmatpush1.msra.mxu0 %v68
    %470 = vmatprep.subr.mxu0 0.0
    %471 = vmatpush1.msra.mxu0 %v69
    %472 = vmatprep.subr.mxu0 0.0
    %473 = vmatpush1.msra.mxu0 %v70
    %474 = vmatprep.subr.mxu0 0.0
    %475 = vmatpush1.msra.mxu0 %v71
    %476 = vmatprep.subr.mxu0 0.0
    %477 = vmatpush1.msra.mxu0 %v72
    %478 = vmatprep.subr.mxu0 0.0
    %479 = vmatpush1.msra.mxu0 %v73
    %480 = vmatprep.subr.mxu0 0.0
    %481 = vmatpush1.msra.mxu0 %v74
    %482 = vmatprep.subr.mxu0 0.0
    %483 = vmatpush1.msra.mxu0 %v75
    %484 = vmatprep.subr.mxu0 0.0
    %485 = vmatpush1.msra.mxu0 %v76
    %486 = vmatprep.subr.mxu0 0.0
    %487 = vmatpush1.msra.mxu0 %v77
    %488 = vmatprep.subr.mxu0 0.0
    %489 = vmatpush1.msra.mxu0 %v78
    %490 = vmatprep.subr.mxu0 0.0
    %491 = vmatpush1.msra.mxu0 0.0
    %492 = vmatprep.subr.mxu0 0.0
    %493 = vmatpush1.msra.mxu0 0.0
    %494 = vmatprep.subr.mxu0 0.0
    %495 = vmatpush1.msra.mxu0 0.0
    %496 = vmatprep.subr.mxu0 0.0
    %497 = vmatpush1.msra.mxu0 0.0
    %498 = vmatprep.subr.mxu0 0.0
    %499 = vmatpush1.msra.mxu0 0.0
    %500 = vmatprep.subr.mxu0 0.0
    %501 = vmatpush1.msra.mxu0 0.0
    %502 = vmatprep.subr.mxu0 0.0
    %503 = vmatpush1.msra.mxu0 0.0
    %504 = vmatprep.subr.mxu0 0.0
    %505 = vmatpush1.msra.mxu0 0.0
    %506 = vmatprep.subr.mxu0 0.0
    %507 = vmatpush1.msra.mxu0 0.0
    %508 = vmatprep.subr.mxu0 0.0
    %509 = vmatpush1.msra.mxu0 0.0
    %510 = vmatprep.subr.mxu0 0.0
    %511 = vmatpush1.msra.mxu0 0.0
    %512 = vmatprep.subr.mxu0 0.0
    %513 = vmatpush1.msra.mxu0 0.0
    %514 = vmatprep.subr.mxu0 0.0
    %515 = vmatpush1.msra.mxu0 0.0
    %516 = vmatprep.subr.mxu0 0.0
    %517 = vmatpush1.msra.mxu0 0.0
    %518 = vmatprep.subr.mxu0 0.0
    %519 = vmatpush1.msra.mxu0 0.0
    %520 = vmatprep.subr.mxu0 0.0
    %521 = vmatpush1.msra.mxu0 0.0
    %522 = vmatprep.mubr.f32.mxu0 0.0
    %523 = vmatmul.mubr.f32.gmra.mrb[0].mxu0 %v452
    %v524 = vpop.f32.mrb[0].mxu0
    %v525 = vadd.f32 0.0, %v524
    %v526 = vpop.f32.mrb[0].mxu0
    %527 = vmatprep.mubr.f32.mxu0 0.0
    %528 = vmatmul.mubr.f32.gmra.mrb[0].mxu0 %v453
    %v529 = vpop.f32.mrb[0].mxu0
    %v530 = vadd.f32 0.0, %v529
    %v531 = vpop.f32.mrb[0].mxu0
    %532 = vmatprep.mubr.f32.mxu0 0.0
    %533 = vmatmul.mubr.f32.gmra.mrb[0].mxu0 %v456
    %v534 = vpop.f32.mrb[0].mxu0
    %v535 = vadd.f32 0.0, %v534
    %v536 = vpop.f32.mrb[0].mxu0
    %537 = vmatprep.mubr.f32.mxu0 0.0
    %538 = vmatmul.mubr.f32.gmra.mrb[0].mxu0 %v457
    %v539 = vpop.f32.mrb[0].mxu0
    %v540 = vadd.f32 0.0, %v539
    %v541 = vpop.f32.mrb[0].mxu0
    %542 = vdwg.mxu0
    %v543 = vmul.f32 %v525, %v525
    %v544 = vmul.f32 %v530, %v530
    %v545 = vsub.f32 %v535, %v543
    %v546 = vsub.f32 %v540, %v544
    %v547 = vmax.f32 %v545, 0.0
    %v548 = vmax.f32 %v546, 0.0
    %v549 = vadd.f32 %v547, 1e-05
    %v550 = vadd.f32 %v548, 1e-05
    %v551 = vrsqrt.pop %v549
    %v552 = vrsqrt.pop %v550
    %v554 = vsel %vm175, %v525, 0
    %v557 = vsel %vm175, %v530, 0
    %v560 = vsel %vm175, %v551, 0
    %v563 = vsel %vm175, %v552, 0
    %565 = vmatprep.subr.mxu0 0.0
    %566 = vmatpush1.msra.mxu0 %v190
    %567 = vmatprep.subr.mxu0 0.0
    %568 = vmatpush1.msra.mxu0 0.0
    %569 = vmatprep.subr.mxu0 0.0
    %570 = vmatpush1.msra.mxu0 0.0
    %571 = vmatprep.subr.mxu0 0.0
    %572 = vmatpush1.msra.mxu0 0.0
    %573 = vmatprep.subr.mxu0 0.0
    %574 = vmatpush1.msra.mxu0 0.0
    %575 = vmatprep.subr.mxu0 0.0
    %576 = vmatpush1.msra.mxu0 0.0
    %577 = vmatprep.subr.mxu0 0.0
    %578 = vmatpush1.msra.mxu0 0.0
    %579 = vmatprep.subr.mxu0 0.0
    %580 = vmatpush1.msra.mxu0 0.0
    %581 = vmatprep.subr.mxu0 0.0
    %582 = vmatpush1.msra.mxu0 0.0
    %583 = vmatprep.subr.mxu0 0.0
    %584 = vmatpush1.msra.mxu0 0.0
    %585 = vmatprep.subr.mxu0 0.0
    %586 = vmatpush1.msra.mxu0 0.0
    %587 = vmatprep.subr.mxu0 0.0
    %588 = vmatpush1.msra.mxu0 0.0
    %589 = vmatprep.subr.mxu0 0.0
    %590 = vmatpush1.msra.mxu0 0.0
    %591 = vmatprep.subr.mxu0 0.0
    %592 = vmatpush1.msra.mxu0 0.0
    %593 = vmatprep.subr.mxu0 0.0
    %594 = vmatpush1.msra.mxu0 0.0
    %595 = vmatprep.subr.mxu0 0.0
    %596 = vmatpush1.msra.mxu0 0.0
    %597 = vmatprep.subr.mxu0 0.0
    %598 = vmatpush1.msra.mxu0 0.0
    %599 = vmatprep.subr.mxu0 0.0
    %600 = vmatpush1.msra.mxu0 0.0
    %601 = vmatprep.subr.mxu0 0.0
    %602 = vmatpush1.msra.mxu0 0.0
    %603 = vmatprep.subr.mxu0 0.0
    %604 = vmatpush1.msra.mxu0 0.0
    %605 = vmatprep.subr.mxu0 0.0
    %606 = vmatpush1.msra.mxu0 0.0
    %607 = vmatprep.subr.mxu0 0.0
    %608 = vmatpush1.msra.mxu0 0.0
    %609 = vmatprep.subr.mxu0 0.0
    %610 = vmatpush1.msra.mxu0 0.0
    %611 = vmatprep.subr.mxu0 0.0
    %612 = vmatpush1.msra.mxu0 0.0
    %613 = vmatprep.subr.mxu0 0.0
    %614 = vmatpush1.msra.mxu0 0.0
    %615 = vmatprep.subr.mxu0 0.0
    %616 = vmatpush1.msra.mxu0 0.0
    %617 = vmatprep.subr.mxu0 0.0
    %618 = vmatpush1.msra.mxu0 0.0
    %619 = vmatprep.subr.mxu0 0.0
    %620 = vmatpush1.msra.mxu0 0.0
    %621 = vmatprep.subr.mxu0 0.0
    %622 = vmatpush1.msra.mxu0 0.0
    %623 = vmatprep.subr.mxu0 0.0
    %624 = vmatpush1.msra.mxu0 0.0
    %625 = vmatprep.subr.mxu0 0.0
    %626 = vmatpush1.msra.mxu0 0.0
    %627 = vmatprep.subr.mxu0 0.0
    %628 = vmatpush1.msra.mxu0 0.0
    %629 = vmatprep.mubr.f32.mxu0 0.0
    %630 = vmatmul.mubr.f32.gmra.mrb[0].mxu0 %v554
    %v631 = vpop.f32.mrb[0].mxu0
    %v632 = vadd.f32 0.0, %v631
    %v633 = vpop.f32.mrb[0].mxu0
    %634 = vmatprep.mubr.f32.mxu0 0.0
    %635 = vmatmul.mubr.f32.gmra.mrb[0].mxu0 %v557
    %v636 = vpop.f32.mrb[0].mxu0
    %v637 = vadd.f32 0.0, %v636
    %v638 = vpop.f32.mrb[0].mxu0
    %639 = vmatprep.mubr.f32.mxu0 0.0
    %640 = vmatmul.mubr.f32.gmra.mrb[0].mxu0 %v560
    %v641 = vpop.f32.mrb[0].mxu0
    %v642 = vadd.f32 0.0, %v641
    %v643 = vpop.f32.mrb[0].mxu0
    %644 = vmatprep.mubr.f32.mxu0 0.0
    %645 = vmatmul.mubr.f32.gmra.mrb[0].mxu0 %v563
    %v646 = vpop.f32.mrb[0].mxu0
    %v647 = vadd.f32 0.0, %v646
    %v648 = vpop.f32.mrb[0].mxu0
    %649 = vdwg.mxu0
    %v650 = vsub.f32 %v452, %v632
    %v651 = vsub.f32 %v453, %v637
    %v652 = vmul.f32 %v650, %v642
    %v653 = vmul.f32 %v651, %v647
    %v655 = vlaneseq
    %v656 = vshrl.u32 %v655, 7
    %v657 = vsub.s32 0, %v656
    %v658 = vrot.slane %v454, %v657
    %v660 = vmul.f32 %v652, %v658
    %v661 = vmul.f32 %v653, %v658
    %v663 = vlaneseq
    %v664 = vshrl.u32 %v663, 7
    %v665 = vsub.s32 0, %v664
    %v666 = vrot.slane %v455, %v665
    %v668 = vadd.f32 %v660, %v666
    %v669 = vadd.f32 %v661, %v666
    %v670 = vpack.c.bf16 %v669, %v668
    %v671 = vld [vmem:[%s12] sm:$0xf]
    %v672 = vld [vmem:[%s12 + $0x4] sm:$0xf]
    %v673 = vld [vmem:[%s12 + $0x8] sm:$0xf]
    %v674 = vld [vmem:[%s12 + $0xc] sm:$0xf]
    %v675 = vld [vmem:[%s12 + $0x10] sm:$0xf]
    %v676 = vld [vmem:[%s12 + $0x14] sm:$0xf]
    %v677 = vld [vmem:[%s12 + $0x18] sm:$0xf]
    %v678 = vld [vmem:[%s12 + $0x1c] sm:$0xf]
    %v679 = vld [vmem:[%s12 + $0x20] sm:$0xf]
    %v680 = vld [vmem:[%s12 + $0x24] sm:$0xf]
    %v681 = vld [vmem:[%s12 + $0x28] sm:$0xf]
    %v682 = vld [vmem:[%s12 + $0x2c] sm:$0xf]
    %v683 = vld [vmem:[%s12 + $0x30] sm:$0xf]
    %v684 = vld [vmem:[%s12 + $0x34] sm:$0xf]
    %v685 = vld [vmem:[%s12 + $0x38] sm:$0xf]
    %v686 = vld [vmem:[%s12 + $0x3c] sm:$0xf]
    %v687 = vld [vmem:[%s13] sm:$0x1]
    %v689 = vlaneseq
    %v690 = vshrl.u32 %v689, 7
    %v691 = vsub.s32 0, %v690
    %v692 = vrot.slane %v687, %v691
    %v710 = vunpack.c.l.b16 %v671
    %v711 = vunpack.c.l.b16 %v672
    %v712 = vunpack.c.l.b16 %v673
    %v713 = vunpack.c.l.b16 %v674
    %v714 = vunpack.c.l.b16 %v675
    %v715 = vunpack.c.l.b16 %v676
    %v716 = vunpack.c.l.b16 %v677
    %v717 = vunpack.c.l.b16 %v678
    %v718 = vunpack.c.l.b16 %v679
    %v719 = vunpack.c.l.b16 %v680
    %v720 = vunpack.c.l.b16 %v681
    %v721 = vunpack.c.l.b16 %v682
    %v722 = vunpack.c.l.b16 %v683
    %v723 = vunpack.c.l.b16 %v684
    %v724 = vunpack.c.l.b16 %v685
    %v725 = vunpack.c.l.b16 %v686
    %v726 = vpack.c.b16 %v711, %v710
    %v727 = vpack.c.b16 %v713, %v712
    %v728 = vpack.c.b16 %v715, %v714
    %v729 = vpack.c.b16 %v717, %v716
    %v730 = vpack.c.b16 %v719, %v718
    %v731 = vpack.c.b16 %v721, %v720
    %v732 = vpack.c.b16 %v723, %v722
    %v733 = vpack.c.b16 %v725, %v724
    %742 = vmatprep.subr.bf16.mxu0 0
    %743 = vmatpush1.bf16.msra.mxu0 %v726
    %744 = vmatprep.subr.bf16.mxu0 0
    %745 = vmatpush1.bf16.msra.mxu0 %v727
    %746 = vmatprep.subr.bf16.mxu0 0
    %747 = vmatpush1.bf16.msra.mxu0 %v728
    %748 = vmatprep.subr.bf16.mxu0 0
    %749 = vmatpush1.bf16.msra.mxu0 %v729
    %750 = vmatprep.subr.bf16.mxu0 0
    %751 = vmatpush1.bf16.msra.mxu0 %v730
    %752 = vmatprep.subr.bf16.mxu0 0
    %753 = vmatpush1.bf16.msra.mxu0 %v731
    %754 = vmatprep.subr.bf16.mxu0 0
    %755 = vmatpush1.bf16.msra.mxu0 %v732
    %756 = vmatprep.subr.bf16.mxu0 0
    %757 = vmatpush1.bf16.msra.mxu0 %v733
    %758 = vmatprep.subr.bf16.mxu0 0
    %759 = vmatpush1.bf16.msra.mxu0 0
    %760 = vmatprep.subr.bf16.mxu0 0
    %761 = vmatpush1.bf16.msra.mxu0 0
    %762 = vmatprep.subr.bf16.mxu0 0
    %763 = vmatpush1.bf16.msra.mxu0 0
    %764 = vmatprep.subr.bf16.mxu0 0
    %765 = vmatpush1.bf16.msra.mxu0 0
    %766 = vmatprep.subr.bf16.mxu0 0
    %767 = vmatpush1.bf16.msra.mxu0 0
    %768 = vmatprep.subr.bf16.mxu0 0
    %769 = vmatpush1.bf16.msra.mxu0 0
    %770 = vmatprep.subr.bf16.mxu0 0
    %771 = vmatpush1.bf16.msra.mxu0 0
    %772 = vmatprep.subr.bf16.mxu0 0
    %773 = vmatpush1.bf16.msra.mxu0 0
    %774 = vmatprep.mubr.bf16.mxu0 0
    %775 = vmatmul.mubr.bf16.gmra.mrb[0].mxu0 %v670
    %v776 = vpop.f32.mrb[0].mxu0
    %v777 = vadd.f32 %v692, %v776
    %v778 = vpop.f32.mrb[0].mxu0
    %v779 = vpop.f32.mrb[0].mxu0
    %v780 = vadd.f32 %v692, %v779
    %v781 = vpop.f32.mrb[0].mxu0
    %782 = vdwg.mxu0
    %v783 = vmul.f32 %v777, 0.5
    %v784 = vmul.f32 %v780, 0.5
    %v785 = vmul.f32 %v777, 0.044715
    %v786 = vmul.f32 %v780, 0.044715
    %v787 = vmul.f32 %v785, %v777
    %v788 = vmul.f32 %v786, %v780
    %v789 = vmul.f32 %v787, %v777
    %v790 = vmul.f32 %v788, %v780
    %v791 = vadd.f32 %v777, %v789
    %v792 = vadd.f32 %v780, %v790
    %v793 = vmul.f32 %v791, 0.7978846
    %v794 = vmul.f32 %v792, 0.7978846
    %v795 = vtanh.pop %v793
    %v796 = vtanh.pop %v794
    %v797 = vadd.f32 %v795, 1.0
    %v798 = vadd.f32 %v796, 1.0
    %v799 = vmul.f32 %v783, %v797
    %v800 = vmul.f32 %v784, %v798
    %v801 = vpack.c.bf16 %v800, %v799
    %v802 = vld [vmem:[%s14] sm:$0xf]
    %v803 = vld [vmem:[%s14 + $0x4] sm:$0xf]
    %v804 = vld [vmem:[%s14 + $0x8] sm:$0xf]
    %v805 = vld [vmem:[%s14 + $0xc] sm:$0xf]
    %v806 = vld [vmem:[%s14 + $0x10] sm:$0xf]
    %v807 = vld [vmem:[%s14 + $0x14] sm:$0xf]
    %v808 = vld [vmem:[%s14 + $0x18] sm:$0xf]
    %v809 = vld [vmem:[%s14 + $0x1c] sm:$0xf]
    %v810 = vld [vmem:[%s14 + $0x20] sm:$0xf]
    %v811 = vld [vmem:[%s14 + $0x24] sm:$0xf]
    %v812 = vld [vmem:[%s14 + $0x28] sm:$0xf]
    %v813 = vld [vmem:[%s14 + $0x2c] sm:$0xf]
    %v814 = vld [vmem:[%s14 + $0x30] sm:$0xf]
    %v815 = vld [vmem:[%s14 + $0x34] sm:$0xf]
    %v816 = vld [vmem:[%s14 + $0x38] sm:$0xf]
    %v817 = vld [vmem:[%s14 + $0x3c] sm:$0xf]
    %v818 = vld [vmem:[%s15] sm:$0x1]
    %v820 = vlaneseq
    %v821 = vshrl.u32 %v820, 7
    %v822 = vsub.s32 0, %v821
    %v823 = vrot.slane %v818, %v822
    %v841 = vunpack.c.l.b16 %v802
    %v842 = vunpack.c.l.b16 %v803
    %v843 = vunpack.c.l.b16 %v804
    %v844 = vunpack.c.l.b16 %v805
    %v845 = vunpack.c.l.b16 %v806
    %v846 = vunpack.c.l.b16 %v807
    %v847 = vunpack.c.l.b16 %v808
    %v848 = vunpack.c.l.b16 %v809
    %v849 = vunpack.c.l.b16 %v810
    %v850 = vunpack.c.l.b16 %v811
    %v851 = vunpack.c.l.b16 %v812
    %v852 = vunpack.c.l.b16 %v813
    %v853 = vunpack.c.l.b16 %v814
    %v854 = vunpack.c.l.b16 %v815
    %v855 = vunpack.c.l.b16 %v816
    %v856 = vunpack.c.l.b16 %v817
    %v857 = vpack.c.b16 %v842, %v841
    %v858 = vpack.c.b16 %v844, %v843
    %v859 = vpack.c.b16 %v846, %v845
    %v860 = vpack.c.b16 %v848, %v847
    %v861 = vpack.c.b16 %v850, %v849
    %v862 = vpack.c.b16 %v852, %v851
    %v863 = vpack.c.b16 %v854, %v853
    %v864 = vpack.c.b16 %v856, %v855
    %873 = vmatprep.subr.bf16.mxu0 0
    %874 = vmatpush1.bf16.msra.mxu0 %v857
    %875 = vmatprep.subr.bf16.mxu0 0
    %876 = vmatpush1.bf16.msra.mxu0 %v858
    %877 = vmatprep.subr.bf16.mxu0 0
    %878 = vmatpush1.bf16.msra.mxu0 %v859
    %879 = vmatprep.subr.bf16.mxu0 0
    %880 = vmatpush1.bf16.msra.mxu0 %v860
    %881 = vmatprep.subr.bf16.mxu0 0
    %882 = vmatpush1.bf16.msra.mxu0 %v861
    %883 = vmatprep.subr.bf16.mxu0 0
    %884 = vmatpush1.bf16.msra.mxu0 %v862
    %885 = vmatprep.subr.bf16.mxu0 0
    %886 = vmatpush1.bf16.msra.mxu0 %v863
    %887 = vmatprep.subr.bf16.mxu0 0
    %888 = vmatpush1.bf16.msra.mxu0 %v864
    %889 = vmatprep.subr.bf16.mxu0 0
    %890 = vmatpush1.bf16.msra.mxu0 0
    %891 = vmatprep.subr.bf16.mxu0 0
    %892 = vmatpush1.bf16.msra.mxu0 0
    %893 = vmatprep.subr.bf16.mxu0 0
    %894 = vmatpush1.bf16.msra.mxu0 0
    %895 = vmatprep.subr.bf16.mxu0 0
    %896 = vmatpush1.bf16.msra.mxu0 0
    %897 = vmatprep.subr.bf16.mxu0 0
    %898 = vmatpush1.bf16.msra.mxu0 0
    %899 = vmatprep.subr.bf16.mxu0 0
    %900 = vmatpush1.bf16.msra.mxu0 0
    %901 = vmatprep.subr.bf16.mxu0 0
    %902 = vmatpush1.bf16.msra.mxu0 0
    %903 = vmatprep.subr.bf16.mxu0 0
    %904 = vmatpush1.bf16.msra.mxu0 0
    %905 = vmatprep.mubr.bf16.mxu0 0
    %906 = vmatmul.mubr.bf16.gmra.mrb[0].mxu0 %v801
    %v907 = vpop.f32.mrb[0].mxu0
    %v908 = vadd.f32 %v823, %v907
    %v909 = vpop.f32.mrb[0].mxu0
    %v910 = vpop.f32.mrb[0].mxu0
    %v911 = vadd.f32 %v823, %v910
    %v912 = vpop.f32.mrb[0].mxu0
    %913 = vdwg.mxu0
    %v914 = vadd.f32 %v908, %v452
    %v915 = vadd.f32 %v911, %v453
    %916 = vst [vmem:[#allocation2] sm:$0xff] %v914
    %917 = vst [vmem:[#allocation2 + $0x8] sm:$0xff] %v915
    // Predicated region
    $region66: #{tpu_custom_call.1} parent=1 // pred_check
      _
    $region67: #{tpu_custom_call.1} parent=1 // pred_check_branch
      %919 = sbr.rel (0) target = $region69
    $region68: #{tpu_custom_call.1} parent=1 // pred_region
      %s921 = ssub.s32 256, 256
      %922 = vsyncadd [#allocation3], %s921
      %s923 = sshll.u32 [#allocation2], 4
      %s924 = int_to_ptr.vmem [resolvable:$true] %s923
      %929 = dma.vmem_to_hbm [thread:$0]  %s924, 256, %s16, [#allocation3], 128, 128, 8
    $region69: #{tpu_custom_call.1} parent=1 // pred_fallthru
      _
    // Predicated region
    $region70: #{tpu_custom_call.1} parent=1 // pred_check
      _
    $region71: #{tpu_custom_call.1} parent=1 // pred_check_branch
      %931 = sbr.rel (0) target = $region73
    $region72: #{tpu_custom_call.1} parent=1 // pred_region
      %932 = dma.done [#allocation3], 256
    $region73: #{tpu_custom_call.1} parent=1 // pred_fallthru
      _
    %933 = vsyncpa [#allocation3], 1

</llo_original>
